<compile_context>
chip_gen: v5e
topology: v5e:2x2
jax: 0.10.0
libtpu: 0.0.40
codegen_flags: <defaults>
</compile_context>

<pallas_src>
import functools

import jax
import jax.numpy as jnp
from jax.experimental import pallas as pl
from jax.experimental.pallas import tpu as pltpu

_LOG_EPS = -46.051701859880914   # log(1e-20): the reference's clamp floor on log(1-p)
_LOG_BIG = 46.051701859880914    # log(1e20):  cap on 1/cp so prev/cp never overflows to inf


def _mono_soft_kernel(*refs, precomputed):
    """One batch tile: alpha[bt, S] from enc (or W(enc)), dec-projection, prev-alpha, noise."""
    if precomputed:
        wx_ref, dproj_ref, prev_ref, noise_ref, bias_ref, vw_ref, out_ref = refs
        wx = wx_ref[...].astype(jnp.float32)                              # [bt, S, A]
        bt, S, A = wx.shape
    else:
        enc_ref, dproj_ref, prev_ref, noise_ref, bias_ref, wt_ref, vw_ref, out_ref = refs
        bt, S, E = enc_ref.shape
        A = wt_ref.shape[1]
        # One MXU matmul with M = bt*S (f32 accumulation even for bf16 operands).
        wx = jnp.dot(enc_ref[...].reshape(bt * S, E), wt_ref[...],
                     preferred_element_type=jnp.float32).reshape(bt, S, A)

    # ---- Energy: tanh(W(enc) + V(dec) + b) . v  (VPU mul + cross-lane reduce over A) ------
    # TODO(synk): for very large bt*S*A, chunk this over S so the [bt,S,A] f32 temporaries
    # stay a few vregs instead of multi-MiB VMEM (matters most under v7x's 64 MiB VMEM).
    e = jnp.tanh(wx + dproj_ref[...][:, None, :])                         # [bt, S, A]
    energy = jnp.sum(e * vw_ref[...], axis=-1)                            # [bt, S] lane-dense

    # ---- p_select = sigmoid(energy + noise + v_bias + r)  (scalar bias read from SMEM) ----
    x = energy + noise_ref[...] + bias_ref[0]                             # [bt, S]
    p_sel = jax.nn.sigmoid(x)
    # exact log(1 - sigmoid(x)) = -softplus(x); floor reproduces the reference clamp(1e-20).
    softplus = jnp.maximum(x, 0.0) + jnp.log(1.0 + jnp.exp(-jnp.abs(x)))
    logq = jnp.maximum(-softplus, _LOG_EPS)                               # [bt, S]

    # ---- sequence recurrences as [bt,S] @ triu[S,S]  (batch on sublanes, seq on lanes) ----
    row = jax.lax.broadcasted_iota(jnp.int32, (S, S), 0)
    col = jax.lax.broadcasted_iota(jnp.int32, (S, S), 1)
    triu = (row <= col).astype(jnp.float32)                               # inclusive-cumsum matrix

    incl = jnp.dot(logq, triu, preferred_element_type=jnp.float32)        # inclusive cumsum
    excl = incl - logq                                                    # exclusive cumsum
    cp = jnp.exp(excl)                                                    # excl. safe_cumprod(1-p)
    inv_cp = jnp.exp(jnp.minimum(-excl, _LOG_BIG))                        # 1/cp without a divide

    csum = jnp.dot(prev_ref[...] * inv_cp, triu,
                   preferred_element_type=jnp.float32)                    # cumsum(prev / cp)
    out_ref[...] = (p_sel * cp * csum).astype(out_ref.dtype)              # [bt, S] lane-dense


def monotonic_attention_soft(params, encoder_outputs, decoder_h,
                             previous_alpha=None, noise=None, *,
                             processed_memory=None, batch_tile=None):
    """Soft (training-time) monotonic attention forward. Returns alpha [B, S] (f32).

    processed_memory: optional precomputed enc @ W^T ([B, S, A]). Tacotron calls this
    attention once per decoder frame with the same encoder_outputs, so caching W(enc)
    across frames removes the dominant per-step HBM traffic and MXU work.
    """
    B, S, _ = encoder_outputs.shape
    A = params["W"].shape[0]
    HI = jax.lax.Precision.HIGHEST

    if previous_alpha is None:
        # Reference branch: energy is computed then discarded; alpha is a fixed one-hot at t=0.
        return jnp.zeros((B, S), jnp.float32).at[:, 0].set(1.0)

    if noise is None:
        noise = jnp.zeros((B, S), jnp.float32)

    # ---- hoisted pieces (one batched XLA matmul + tiny scalar/vector folds) --------------
    dproj = (jnp.matmul(decoder_h.astype(jnp.float32),
                        params["V"].T.astype(jnp.float32), precision=HI)
             + params["b"].astype(jnp.float32))                           # [B, A]
    # weight-normalized v: w_eff = g * v / ||v||
    vw = (params["v_weight_g"] * params["v_weight_v"]
          / jnp.linalg.norm(params["v_weight_v"])).astype(jnp.float32)    # [1, A]
    bias = (params["v_bias"] + params["r"]).astype(jnp.float32)           # (1,)  -> SMEM scalar
    prev = previous_alpha.astype(jnp.float32)                             # [B, S]
    noise = noise.astype(jnp.float32)                                     # [B, S]

    precomputed = processed_memory is not None
    if precomputed:
        main_in = processed_memory                                        # [B, S, A]
        feat = A
    else:
        main_in = encoder_outputs                                         # [B, S, E]
        feat = encoder_outputs.shape[-1]
        # enc / W^T keep the caller's dtype (bf16 halves DMA bytes); MXU accumulates f32.
        wt = params["W"].T.astype(encoder_outputs.dtype)                  # [E, A]

    # ---- VMEM budget (v5e/v6e: 128 MiB physical; v7x: 64 MiB) -----------------------------
    try:
        vmem_cap = int(pltpu.get_tpu_info().vmem_capacity_bytes)
    except Exception:
        vmem_cap = 64 * 1024 * 1024
    vmem_limit = min(vmem_cap * 3 // 4, 100 * 1024 * 1024)

    in_item = jnp.dtype(main_in.dtype).itemsize

    def _vmem_est(btc):
        main_blk = 2 * btc * S * feat * in_item        # double-buffered main input block
        inter = 3 * btc * S * A * 4                    # wx / tanh / product f32 temporaries
        seq = 12 * btc * S * 4                         # [bt,S] temporaries + prev/noise/out blocks
        tri_b = S * S * 4                              # in-kernel triangular mask
        consts = 2 * (feat * A + 2 * A) * 4            # W^T / vw residents
        return main_blk + inter + seq + tri_b + consts

    # ---- batch tiling: biggest multiple-of-8 tile that fits, grid >= 2 when possible ------
    # (grid >= 2 lets the "parallel" axis shard across both v7x TensorCores.)
    if batch_tile is not None:
        bt = batch_tile
    elif B % 8 == 0 and B > 8:
        budget = vmem_limit // 2
        bt = 8
        for cand in (16, 32, 64, 128):
            if B % cand == 0 and B // cand >= 2 and _vmem_est(cand) <= budget:
                bt = cand
    else:
        bt = B
    assert B % bt == 0 and (bt == B or bt % 8 == 0), "bad batch tile"

    common_specs = [
        pl.BlockSpec((bt, A), lambda i: (i, 0)),                 # dec_h @ V^T + b   (hoisted)
        pl.BlockSpec((bt, S), lambda i: (i, 0)),                 # previous_alpha    (lane-dense)
        pl.BlockSpec((bt, S), lambda i: (i, 0)),                 # gaussian noise    (lane-dense)
        pl.BlockSpec(memory_space=pltpu.MemorySpace.SMEM),       # v_bias + r scalar (SMEM)
    ]
    vw_spec = pl.BlockSpec((1, A), lambda i: (0, 0))             # weight-normed v   (resident)
    if precomputed:
        in_specs = ([pl.BlockSpec((bt, S, A), lambda i: (i, 0, 0))]   # cached W(enc)
                    + common_specs + [vw_spec])
        args = (main_in, dproj, prev, noise, bias, vw)
    else:
        in_specs = ([pl.BlockSpec((bt, S, feat), lambda i: (i, 0, 0))]  # encoder_outputs
                    + common_specs
                    + [pl.BlockSpec((feat, A), lambda i: (0, 0)),       # W^T (resident)
                       vw_spec])
        args = (main_in, dproj, prev, noise, bias, wt, vw)

    out = pl.pallas_call(
        functools.partial(_mono_soft_kernel, precomputed=precomputed),
        out_shape=jax.ShapeDtypeStruct((B, S), jnp.float32),
        grid=(B // bt,),
        in_specs=in_specs,
        out_specs=pl.BlockSpec((bt, S), lambda i: (i, 0)),       # alpha (lane-dense)
        compiler_params=pltpu.CompilerParams(
            dimension_semantics=("parallel",),
            vmem_limit_bytes=vmem_limit),
    )(*args)
    return out


def _reference_soft(params, enc, dec_h, prev, noise):
    """Pure-JAX (f32) reference mirroring the PyTorch soft() path."""
    HI = jax.lax.Precision.HIGHEST
    vw = (params["v_weight_g"] * params["v_weight_v"]
          / jnp.linalg.norm(params["v_weight_v"]))                 # [1, D]
    wx = jnp.matmul(enc, params["W"].T, precision=HI)              # [B, S, A]
    vh = jnp.matmul(dec_h, params["V"].T, precision=HI)            # [B, A]
    e = jnp.tanh(wx + vh[:, None, :] + params["b"])
    energy = (jnp.matmul(e, vw.T, precision=HI)[..., 0]
              + params["v_bias"][0] + params["r"][0])              # [B, S]
    p = jax.nn.sigmoid(energy + noise)
    logq = jnp.log(jnp.clip(1.0 - p, 1e-20, 1.0))
    logsum = jnp.cumsum(logq, axis=1)
    Bsz = enc.shape[0]
    logsum_excl = jnp.concatenate([jnp.zeros((Bsz, 1)), logsum], axis=1)[:, :-1]
    cp = jnp.exp(logsum_excl)
    return p * cp * jnp.cumsum(prev / cp, axis=1)


if __name__ == "__main__":
    # Small shapes implied by the forward: enc_dim=16, dec_dim=att_dim=32
    # (Energy.v = Linear(dec_dim, 1) is applied to att_dim features, so dec_dim == att_dim).
    B, S, E, D, A = 2, 8, 16, 32, 32
    init_r = -4.0

    key = jax.random.PRNGKey(0)
    ks = jax.random.split(key, 10)
    params = {
        "W": jax.random.normal(ks[0], (A, E), jnp.float32) * 0.1,           # Linear(enc_dim, att_dim)
        "V": jax.random.normal(ks[1], (A, D), jnp.float32) * 0.1,           # Linear(dec_dim, att_dim)
        "b": jax.random.normal(ks[2], (A,), jnp.float32),                   # b ~ normal_()
        "v_weight_v": jax.random.normal(ks[3], (1, D), jnp.float32) * 0.1,  # weight_norm direction
        "v_weight_g": jnp.sqrt(jnp.array([1.0 / A], jnp.float32)),          # weight_g = sqrt(1/att_dim)
        "v_bias": jax.random.normal(ks[4], (1,), jnp.float32) * 0.1,
        "r": jnp.array([init_r], jnp.float32),
    }

    encoder_outputs = jax.random.normal(ks[5], (B, S, E), jnp.float32)
    decoder_h = jax.random.normal(ks[6], (B, D), jnp.float32)
    previous_alpha = jax.nn.softmax(jax.random.normal(ks[7], (B, S), jnp.float32), axis=-1)
    # Gaussian noise of the reference is torch RNG; generated deterministically here instead.
    noise = jax.random.normal(ks[8], (B, S), jnp.float32)

    ref = _reference_soft(params, encoder_outputs, decoder_h, previous_alpha, noise)

    # f32 path: tight check against the pure-JAX reference.
    alpha = monotonic_attention_soft(params, encoder_outputs, decoder_h,
                                     previous_alpha, noise)
    alpha = jax.block_until_ready(alpha)
    assert alpha.shape == (B, S)
    assert jnp.allclose(alpha, ref, atol=1e-5, rtol=1e-4), (alpha, ref)

    # cached processed_memory path (W(enc) computed once per utterance, reused per frame).
    pm = jnp.matmul(encoder_outputs, params["W"].T, precision=jax.lax.Precision.HIGHEST)
    alpha_pm = jax.block_until_ready(monotonic_attention_soft(
        params, encoder_outputs, decoder_h, previous_alpha, noise, processed_memory=pm))
    assert jnp.allclose(alpha_pm, ref, atol=1e-5, rtol=1e-4), (alpha_pm, ref)

    # bf16 encoder path (halves enc DMA bytes; recurrence & elementwise math stay f32).
    alpha_bf16 = jax.block_until_ready(monotonic_attention_soft(
        params, encoder_outputs.astype(jnp.bfloat16), decoder_h, previous_alpha, noise))
    assert jnp.allclose(alpha_bf16, ref, atol=2e-3, rtol=1e-1), (alpha_bf16, ref)

    # previous_alpha=None branch: fixed one-hot at t=0.
    alpha0 = jax.block_until_ready(
        monotonic_attention_soft(params, encoder_outputs, decoder_h, None, None))
    assert alpha0.shape == (B, S)
    assert jnp.allclose(alpha0[:, 0], 1.0) and jnp.allclose(alpha0[:, 1:], 0.0)

    # multi-tile grid path (B=16 -> bt=8, grid=2: both v7x TensorCores get work).
    B2, S2 = 16, 128
    kb = jax.random.split(jax.random.PRNGKey(1), 4)
    enc2 = jax.random.normal(kb[0], (B2, S2, E), jnp.float32)
    dec2 = jax.random.normal(kb[1], (B2, D), jnp.float32)
    prev2 = jax.nn.softmax(jax.random.normal(kb[2], (B2, S2), jnp.float32), axis=-1)
    noise2 = jax.random.normal(kb[3], (B2, S2), jnp.float32)
    ref2 = _reference_soft(params, enc2, dec2, prev2, noise2)
    alpha2 = jax.block_until_ready(
        monotonic_attention_soft(params, enc2, dec2, prev2, noise2))
    assert alpha2.shape == (B2, S2)
    assert jnp.allclose(alpha2, ref2, atol=1e-4, rtol=1e-3), \
        float(jnp.max(jnp.abs(alpha2 - ref2)))

    # TODO(synk): eval-mode hard() path (data-dependent per-batch fallback loop) not implemented.
    print("KERNEL_OK")
</pallas_src>

<mosaic_0001>
module attributes {stable_mosaic.version = 11 : i64} {
  func.func @_mono_soft_kernel(%arg0: i32, %arg1: memref<2x8x16xf32, #tpu.memory_space<vmem>>, %arg2: memref<2x32xf32, #tpu.memory_space<vmem>>, %arg3: memref<2x8xf32, #tpu.memory_space<vmem>>, %arg4: memref<2x8xf32, #tpu.memory_space<vmem>>, %arg5: memref<1xf32, #tpu.memory_space<smem>>, %arg6: memref<16x32xf32, #tpu.memory_space<vmem>>, %arg7: memref<1x32xf32, #tpu.memory_space<vmem>>, %arg8: memref<2x8xf32, #tpu.memory_space<vmem>>) attributes {dimension_semantics = [#tpu.dimension_semantics<parallel>], iteration_bounds = array<i64: 1>, scalar_prefetch = 0 : i64, scratch_operands = 0 : i64, tpu.core_type = #tpu.core_type<tc>, window_params = [{transform_indices = @transform_0, window_bounds = array<i64: 2, 8, 16>}, {transform_indices = @transform_1, window_bounds = array<i64: 2, 32>}, {transform_indices = @transform_2, window_bounds = array<i64: 2, 8>}, {transform_indices = @transform_3, window_bounds = array<i64: 2, 8>}, {transform_indices = @transform_4, window_bounds = array<i64: 1>}, {pipeline_mode = #tpu.pipeline_mode<synchronous>, transform_indices = @transform_5, window_bounds = array<i64: 16, 32>}, {pipeline_mode = #tpu.pipeline_mode<synchronous>, transform_indices = @transform_6, window_bounds = array<i64: 1, 32>}, {transform_indices = @transform_7, window_bounds = array<i64: 2, 8>}]} {
    %c0 = arith.constant 0 : index
    %c0_0 = arith.constant 0 : index
    %c0_1 = arith.constant 0 : index
    %0 = vector.load %arg1[%c0, %c0_0, %c0_1] : memref<2x8x16xf32, #tpu.memory_space<vmem>>, vector<2x8x16xf32>
    %1 = vector.shape_cast %0 : vector<2x8x16xf32> to vector<16x16xf32>
    %c0_2 = arith.constant 0 : index
    %c0_3 = arith.constant 0 : index
    %2 = vector.load %arg6[%c0_2, %c0_3] : memref<16x32xf32, #tpu.memory_space<vmem>>, vector<16x32xf32>
    %cst = arith.constant dense<0.000000e+00> : vector<16x32xf32>
    %3 = tpu.matmul %1, %2, %cst {dimension_numbers = #tpu.dot_dimension_numbers<[1], [0], [0], [1], [0, 0, 1, 1], [], []>} : vector<16x16xf32>, vector<16x32xf32>, vector<16x32xf32> -> vector<16x32xf32>
    %4 = vector.shape_cast %3 : vector<16x32xf32> to vector<2x8x32xf32>
    %c0_4 = arith.constant 0 : index
    %c0_5 = arith.constant 0 : index
    %5 = vector.load %arg2[%c0_4, %c0_5] : memref<2x32xf32, #tpu.memory_space<vmem>>, vector<2x32xf32>
    %6 = vector.shape_cast %5 : vector<2x32xf32> to vector<2x1x32xf32>
    %7 = vector.broadcast %6 : vector<2x1x32xf32> to vector<2x8x32xf32>
    %8 = arith.addf %4, %7 : vector<2x8x32xf32>
    %9 = math.tanh %8 : vector<2x8x32xf32>
    %c0_6 = arith.constant 0 : index
    %c0_7 = arith.constant 0 : index
    %10 = vector.load %arg7[%c0_6, %c0_7] : memref<1x32xf32, #tpu.memory_space<vmem>>, vector<1x32xf32>
    %11 = vector.shape_cast %10 : vector<1x32xf32> to vector<1x1x32xf32>
    %12 = vector.broadcast %11 : vector<1x1x32xf32> to vector<2x8x32xf32>
    %13 = arith.mulf %9, %12 : vector<2x8x32xf32>
    %cst_8 = arith.constant dense<0.000000e+00> : vector<2x8xf32>
    %14 = vector.multi_reduction <add>, %13, %cst_8 [2] : vector<2x8x32xf32> to vector<2x8xf32>
    %c0_9 = arith.constant 0 : index
    %c0_10 = arith.constant 0 : index
    %15 = vector.load %arg4[%c0_9, %c0_10] : memref<2x8xf32, #tpu.memory_space<vmem>>, vector<2x8xf32>
    %16 = arith.addf %14, %15 : vector<2x8xf32>
    %c0_11 = arith.constant 0 : index
    %17 = memref.load %arg5[%c0_11] : memref<1xf32, #tpu.memory_space<smem>>
    %18 = vector.broadcast %17 : f32 to vector<2x8xf32>
    %19 = arith.addf %16, %18 : vector<2x8xf32>
    %20 = arith.negf %19 : vector<2x8xf32>
    %21 = math.exp %20 : vector<2x8xf32>
    %cst_12 = arith.constant 1.000000e+00 : f32
    %22 = vector.broadcast %cst_12 : f32 to vector<2x8xf32>
    %23 = arith.addf %22, %21 : vector<2x8xf32>
    %24 = arith.divf %22, %23 : vector<2x8xf32>
    %cst_13 = arith.constant 0.000000e+00 : f32
    %25 = vector.broadcast %cst_13 : f32 to vector<2x8xf32>
    %26 = arith.maximumf %19, %25 : vector<2x8xf32>
    %27 = math.absf %19 : vector<2x8xf32>
    %cst_14 = arith.constant 0.000000e+00 : f32
    %28 = vector.broadcast %cst_14 : f32 to vector<2x8xf32>
    %29 = arith.subf %28, %27 : vector<2x8xf32>
    %30 = math.exp %29 : vector<2x8xf32>
    %cst_15 = arith.constant 1.000000e+00 : f32
    %31 = vector.broadcast %cst_15 : f32 to vector<2x8xf32>
    %32 = arith.addf %31, %30 : vector<2x8xf32>
    %33 = math.log %32 : vector<2x8xf32>
    %34 = arith.addf %26, %33 : vector<2x8xf32>
    %cst_16 = arith.constant 0.000000e+00 : f32
    %35 = vector.broadcast %cst_16 : f32 to vector<2x8xf32>
    %36 = arith.subf %35, %34 : vector<2x8xf32>
    %cst_17 = arith.constant -4.605170e+01 : f32
    %37 = vector.broadcast %cst_17 : f32 to vector<2x8xf32>
    %38 = arith.maximumf %36, %37 : vector<2x8xf32>
    %39 = tpu.iota {dimensions = array<i32: 0>} : vector<8x8xi32>
    %40 = tpu.iota {dimensions = array<i32: 1>} : vector<8x8xi32>
    %41 = arith.cmpi sle, %39, %40 : vector<8x8xi32>
    %42 = arith.extui %41 : vector<8x8xi1> to vector<8x8xi32>
    %43 = arith.sitofp %42 : vector<8x8xi32> to vector<8x8xf32>
    %cst_18 = arith.constant dense<0.000000e+00> : vector<2x8xf32>
    %44 = tpu.matmul %38, %43, %cst_18 {dimension_numbers = #tpu.dot_dimension_numbers<[1], [0], [0], [1], [0, 0, 1, 1], [], []>} : vector<2x8xf32>, vector<8x8xf32>, vector<2x8xf32> -> vector<2x8xf32>
    %45 = arith.subf %44, %38 : vector<2x8xf32>
    %46 = math.exp %45 : vector<2x8xf32>
    %cst_19 = arith.constant 0.000000e+00 : f32
    %47 = vector.broadcast %cst_19 : f32 to vector<2x8xf32>
    %48 = arith.subf %47, %45 : vector<2x8xf32>
    %cst_20 = arith.constant 4.605170e+01 : f32
    %49 = vector.broadcast %cst_20 : f32 to vector<2x8xf32>
    %50 = arith.minimumf %48, %49 : vector<2x8xf32>
    %51 = math.exp %50 : vector<2x8xf32>
    %c0_21 = arith.constant 0 : index
    %c0_22 = arith.constant 0 : index
    %52 = vector.load %arg3[%c0_21, %c0_22] : memref<2x8xf32, #tpu.memory_space<vmem>>, vector<2x8xf32>
    %53 = arith.mulf %52, %51 : vector<2x8xf32>
    %cst_23 = arith.constant dense<0.000000e+00> : vector<2x8xf32>
    %54 = tpu.matmul %53, %43, %cst_23 {dimension_numbers = #tpu.dot_dimension_numbers<[1], [0], [0], [1], [0, 0, 1, 1], [], []>} : vector<2x8xf32>, vector<8x8xf32>, vector<2x8xf32> -> vector<2x8xf32>
    %55 = arith.mulf %24, %46 : vector<2x8xf32>
    %56 = arith.mulf %55, %54 : vector<2x8xf32>
    %c0_24 = arith.constant 0 : index
    %c0_25 = arith.constant 0 : index
    %57 = vector.load %arg8[%c0_24, %c0_25] : memref<2x8xf32, #tpu.memory_space<vmem>>, vector<2x8xf32>
    tpu.vector_store %arg8[%c0_24, %c0_25], %56 {strides = array<i32>} : memref<2x8xf32, #tpu.memory_space<vmem>>, vector<2x8xf32>,
    return
  }
  func.func @transform_0(%arg0: i32) -> (i32, i32, i32) {
    %c0_i32 = arith.constant 0 : i32
    %c0_i32_0 = arith.constant 0 : i32
    %c0_i32_1 = arith.constant 0 : i32
    return %arg0, %c0_i32, %c0_i32_0 : i32, i32, i32
  }
  func.func @transform_1(%arg0: i32) -> (i32, i32) {
    %c0_i32 = arith.constant 0 : i32
    %c0_i32_0 = arith.constant 0 : i32
    return %arg0, %c0_i32 : i32, i32
  }
  func.func @transform_2(%arg0: i32) -> (i32, i32) {
    %c0_i32 = arith.constant 0 : i32
    %c0_i32_0 = arith.constant 0 : i32
    return %arg0, %c0_i32 : i32, i32
  }
  func.func @transform_3(%arg0: i32) -> (i32, i32) {
    %c0_i32 = arith.constant 0 : i32
    %c0_i32_0 = arith.constant 0 : i32
    return %arg0, %c0_i32 : i32, i32
  }
  func.func @transform_4(%arg0: i32) -> i32 {
    %c0_i32 = arith.constant 0 : i32
    %c0_i32_0 = arith.constant 0 : i32
    return %c0_i32 : i32
  }
  func.func @transform_5(%arg0: i32) -> (i32, i32) {
    %c0_i32 = arith.constant 0 : i32
    %c0_i32_0 = arith.constant 0 : i32
    %c0_i32_1 = arith.constant 0 : i32
    return %c0_i32, %c0_i32_0 : i32, i32
  }
  func.func @transform_6(%arg0: i32) -> (i32, i32) {
    %c0_i32 = arith.constant 0 : i32
    %c0_i32_0 = arith.constant 0 : i32
    %c0_i32_1 = arith.constant 0 : i32
    return %c0_i32, %c0_i32_0 : i32, i32
  }
  func.func @transform_7(%arg0: i32) -> (i32, i32) {
    %c0_i32 = arith.constant 0 : i32
    %c0_i32_0 = arith.constant 0 : i32
    return %arg0, %c0_i32 : i32, i32
  }
}

</mosaic_0001>

<llo_original>
// kernel: tpu_custom_call.1
$region0: #{tpu_custom_call.1}
  #allocation0 [shape = 'u32[]', space=smem, size = 0x4, offset = 0x4, fixed_abs, tag = 'smem constant byte address 0x4 - core index']
  #allocation1 [shape = 'u32[72,128]{1,0:T(1,128)}', space=vmem, size = 0x9000, scoped, tag = 'internal scratch']
  #allocation2 [shape = 'f32[1]{0:T(128)S(6)}', space=smem, size = 0x200, scoped, tag = 'scoped memory for tpu_custom_call.1']
  %s0 = inlined_call_operand.hbm [shape: f32[2,8,16], index: 0, kind: input, shape index: {}]
  %s1 = inlined_call_operand.vmem [shape: f32[2,32], index: 1, kind: input, shape index: {}]
  %s2 = inlined_call_operand.hbm [shape: f32[2,8], index: 2, kind: input, shape index: {}]
  %s3 = inlined_call_operand.vmem [shape: f32[2,8], index: 3, kind: input, shape index: {}]
  %s4 = inlined_call_operand.<no memory space> [shape: f32[1], index: 4, kind: input, shape index: {}]
  %s5 = inlined_call_operand.hbm [shape: f32[16,32], index: 5, kind: input, shape index: {}]
  %s6 = inlined_call_operand.vmem [shape: f32[1,32], index: 6, kind: input, shape index: {}]
  %s7 = inlined_call_operand.hbm [shape: f32[2,8], index: 7, kind: output, shape index: {}]
  %s8 = sld [smem:[#allocation0]]
  $region50: #{tpu_custom_call.1} parent=0
    _
  %s10 = ssub.s32 1, %s8
  %s11 = scalar_select 0, %s10, %s8
  %12 = sst [smem:[#allocation2]] %s4
  $region1: #{tpu_custom_call.1} parent=0
    #allocation3 [shape = 'u8[8192]{0}', space=vmem, size = 0x2000, scoped, tag = 'input window, operand 0, single buffered']
    #allocation4 [shape = 's32[1]{0}', space=sflag, size = 0x4, scoped, tag = 'scoped memory for tpu_custom_call.1']
    #allocation5 [shape = 's32[1]{0}', space=sflag, size = 0x4, scoped, tag = 'scoped memory for tpu_custom_call.1']
    #allocation6 [shape = 'u8[1024]{0}', space=vmem, size = 0x400, scoped, tag = 'input window, operand 2, single buffered']
    #allocation7 [shape = 's32[1]{0}', space=sflag, size = 0x4, scoped, tag = 'scoped memory for tpu_custom_call.1']
    #allocation8 [shape = 'u8[8192]{0}', space=vmem, size = 0x2000, scoped, tag = 'input window, operand 5, single buffered']
    #allocation9 [shape = 'u8[1024]{0}', space=vmem, size = 0x400, scoped, tag = 'output window, operand 0, single buffered']
    %13 = vsyncpa [#allocation4], 0
    %14 = vsyncpa [#allocation7], 0
    %15 = vsyncpa [#allocation5], 0
    // Predicated region
    $region2: #{tpu_custom_call.1} parent=1 // pred_check
      _
    $region3: #{tpu_custom_call.1} parent=1 // pred_check_branch
      %17 = sbr.rel (0) target = $region5
    $region4: #{tpu_custom_call.1} parent=1 // pred_region
      %19 = vsyncadd [#allocation4], 0
      %s20 = sshll.u32 %s0, 4
      %s21 = int_to_ptr.hbm [resolvable:$true] %s20
      %s22 = sshll.u32 [#allocation3], 4
      %s23 = int_to_ptr.vmem [resolvable:$true] %s22
      %28 = dma.hbm_to_vmem [thread:$0]  %s21, 256, %s23, [#allocation4], 128, 128, 8
    $region5: #{tpu_custom_call.1} parent=1 // pred_fallthru
      _
    // Predicated region
    $region6: #{tpu_custom_call.1} parent=1 // pred_check
      _
    $region7: #{tpu_custom_call.1} parent=1 // pred_check_branch
      %30 = sbr.rel (0) target = $region9
    $region8: #{tpu_custom_call.1} parent=1 // pred_region
      _
    $region9: #{tpu_custom_call.1} parent=1 // pred_fallthru
      _
    // Predicated region
    $region10: #{tpu_custom_call.1} parent=1 // pred_check
      _
    $region11: #{tpu_custom_call.1} parent=1 // pred_check_branch
      %32 = sbr.rel (0) target = $region13
    $region12: #{tpu_custom_call.1} parent=1 // pred_region
      %34 = vsyncadd [#allocation7], 0
      %s36 = sshll.u32 %s2, 4
      %s37 = int_to_ptr.hbm [resolvable:$true] %s36
      %s38 = sshll.u32 [#allocation6], 4
      %s39 = int_to_ptr.vmem [resolvable:$true] %s38
      %41 = dma.hbm_to_vmem [thread:$0]  %s37, 32, %s39, [#allocation7]
    $region13: #{tpu_custom_call.1} parent=1 // pred_fallthru
      _
    // Predicated region
    $region14: #{tpu_custom_call.1} parent=1 // pred_check
      _
    $region15: #{tpu_custom_call.1} parent=1 // pred_check_branch
      %43 = sbr.rel (0) target = $region17
    $region16: #{tpu_custom_call.1} parent=1 // pred_region
      _
    $region17: #{tpu_custom_call.1} parent=1 // pred_fallthru
      _
    // Predicated region
    $region18: #{tpu_custom_call.1} parent=1 // pred_check
      _
    $region19: #{tpu_custom_call.1} parent=1 // pred_check_branch
      %45 = sbr.rel (0) target = $region21
    $region20: #{tpu_custom_call.1} parent=1 // pred_region
      _
    $region21: #{tpu_custom_call.1} parent=1 // pred_fallthru
      _
    // Predicated region
    $region22: #{tpu_custom_call.1} parent=1 // pred_check
      _
    $region23: #{tpu_custom_call.1} parent=1 // pred_check_branch
      %47 = sbr.rel (0) target = $region25
    $region24: #{tpu_custom_call.1} parent=1 // pred_region
      %49 = vsyncadd [#allocation7], 0
      %s50 = sshll.u32 %s5, 4
      %s51 = int_to_ptr.hbm [resolvable:$true] %s50
      %s52 = sshll.u32 [#allocation8], 4
      %s53 = int_to_ptr.vmem [resolvable:$true] %s52
      %58 = dma.hbm_to_vmem [thread:$0]  %s51, 256, %s53, [#allocation7], 128, 128, 8
    $region25: #{tpu_custom_call.1} parent=1 // pred_fallthru
      _
    // Predicated region
    $region26: #{tpu_custom_call.1} parent=1 // pred_check
      _
    $region27: #{tpu_custom_call.1} parent=1 // pred_check_branch
      %60 = sbr.rel (0) target = $region29
    $region28: #{tpu_custom_call.1} parent=1 // pred_region
      _
    $region29: #{tpu_custom_call.1} parent=1 // pred_fallthru
      _
    // Predicated region
    $region30: #{tpu_custom_call.1} parent=1 // pred_check
      _
    $region31: #{tpu_custom_call.1} parent=1 // pred_check_branch
      %62 = sbr.rel (0) target = $region33
    $region32: #{tpu_custom_call.1} parent=1 // pred_region
      %64 = dma.done [#allocation4], 256
    $region33: #{tpu_custom_call.1} parent=1 // pred_fallthru
      _
    // Predicated region
    $region34: #{tpu_custom_call.1} parent=1 // pred_check
      _
    $region35: #{tpu_custom_call.1} parent=1 // pred_check_branch
      %66 = sbr.rel (0) target = $region37
    $region36: #{tpu_custom_call.1} parent=1 // pred_region
      %68 = dma.done [#allocation7], 32
    $region37: #{tpu_custom_call.1} parent=1 // pred_fallthru
      _
    // Predicated region
    $region38: #{tpu_custom_call.1} parent=1 // pred_check
      _
    $region39: #{tpu_custom_call.1} parent=1 // pred_check_branch
      %70 = sbr.rel (0) target = $region41
    $region40: #{tpu_custom_call.1} parent=1 // pred_region
      %72 = dma.done [#allocation7], 256
    $region41: #{tpu_custom_call.1} parent=1 // pred_fallthru
      _
    %v73 = vld [vmem:[#allocation3] sm:$0xff]
    %v74 = vld [vmem:[#allocation3 + $0x8] sm:$0xff]
    %v75 = vld [vmem:[#allocation8] sm:$0xff]
    %v76 = vld [vmem:[#allocation8 + $0x8] sm:$0xff]
    %vm77 = vcmask 130048
    %v79 = vsel %vm77, %v73, 0
    %v82 = vsel %vm77, %v74, 0
    %84 = vmatpush.msra.mxu0 0.0
    %85 = vmatpush.msra.mxu0 0.0
    %86 = vmatpush.msra.mxu0 0.0
    %87 = vmatpush.msra.mxu0 0.0
    %88 = vmatpush.msra.mxu0 0.0
    %89 = vmatpush.msra.mxu0 0.0
    %90 = vmatpush.msra.mxu0 0.0
    %91 = vmatpush.msra.mxu0 0.0
    %92 = vmatpush.msra.mxu0 0.0
    %93 = vmatpush.msra.mxu0 0.0
    %94 = vmatpush.msra.mxu0 0.0
    %95 = vmatpush.msra.mxu0 0.0
    %96 = vmatpush.msra.mxu0 0.0
    %97 = vmatpush.msra.mxu0 0.0
    %98 = vmatpush.msra.mxu0 %v76
    %99 = vmatpush.msra.mxu0 %v75
    %100 = vmatmul.f32.gmra.mxu0 %v79
    %v101 = vpop.f32.mrf.mxu0
    %v102 = vadd.f32 0.0, %v101
    %103 = vmatmul.f32.gmra.mxu0 %v82
    %v104 = vpop.f32.mrf.mxu0
    %v105 = vadd.f32 0.0, %v104
    %106 = vdwg.mxu0
    %v107 = vld [vmem:[%s1] sm:$0x3]
    %v109 = vrot.slane %v107, 1
    %v110 = vperm.slane %v107, 0
    %v111 = vperm.slane %v109, 0
    %v114 = vadd.f32 %v102, %v110
    %v115 = vadd.f32 %v105, %v111
    %v116 = vtanh.pop %v114
    %v117 = vtanh.pop %v115
    %v118 = vld [vmem:[%s6] sm:$0x1]
    %v120 = vperm.slane %v118, 0
    %v122 = vmul.f32 %v116, %v120
    %v123 = vmul.f32 %v117, %v120
    %vm124 = vcmask 261120
    %v125 = vsel %vm124, %v122, 0.0
    %126 = vadd.xlane.f32.xlu0 %v125
    %v127 = vpop.xlane.xlu0 %126
    %v128 = vsel %vm124, %v123, 0.0
    %129 = vadd.xlane.f32.xlu0 %v128
    %v130 = vpop.xlane.xlu0 %129
    %v131 = vld [vmem:[%s3] sm:$0x3]
    %v133 = vperm.slane %v131, 0
    %v134 = vlaneseq
    %v135 = vshrl.u32 %v134, 7
    %137 = vset.pattern.permute.xlu0 %v135
    %138 = vperm.xlu0 %137, %v133
    %v139 = vpop.permute.xlu0 %138
    %v140 = vperm.slane %v131, 1
    %v141 = vlaneseq
    %v142 = vshrl.u32 %v141, 7
    %144 = vset.pattern.permute.xlu0 %v142
    %145 = vperm.xlu0 %144, %v140
    %v146 = vpop.permute.xlu0 %145
    %v149 = vadd.f32 %v127, %v139
    %v150 = vadd.f32 %v130, %v146
    %s151 = sld [smem:[#allocation2]]
    %v152 = vstv %s151
    %v153 = vadd.f32 %v149, %v152
    %v154 = vadd.f32 %v150, %v152
    %v155 = vxor.u32 %v153, 2147483648
    %v156 = vxor.u32 %v154, 2147483648
    %v157 = vmul.f32 %v155, 1.442695
    %v158 = vpow.pop %v157
    %v159 = vmul.f32 %v156, 1.442695
    %v160 = vpow.pop %v159
    %v161 = vadd.f32 %v158, 1.0
    %v162 = vadd.f32 %v160, 1.0
    %v163 = vrcp.pop %v161
    %v164 = vmul.f32 %v161, %v163
    %v165 = vsub.f32 1.0, %v164
    %v166 = vmul.f32 %v163, %v165
    %v167 = vadd.f32 %v163, %v166
    %vm168 = vweird.f32 %v161
    %vm169 = vweird.f32 %v163
    %vm170 = vmor %vm168, %vm169
    %v171 = vsel %vm170, %v163, %v167
    %v172 = vand.u32 2147483647, %v161
    %vm173 = vcmp.eq.f32.partialorder %v172, 8.507059e+37
    %v174 = vand.u32 %v161, 2147483648
    %v175 = vor.u32 1.1754944e-38, %v174
    %v176 = vsel %vm173, %v175, %v171
    %v177 = vmul.f32 1.0, %v176
    %v178 = vrcp.pop %v162
    %v179 = vmul.f32 %v162, %v178
    %v180 = vsub.f32 1.0, %v179
    %v181 = vmul.f32 %v178, %v180
    %v182 = vadd.f32 %v178, %v181
    %vm183 = vweird.f32 %v162
    %vm184 = vweird.f32 %v178
    %vm185 = vmor %vm183, %vm184
    %v186 = vsel %vm185, %v178, %v182
    %v187 = vand.u32 2147483647, %v162
    %vm188 = vcmp.eq.f32.partialorder %v187, 8.507059e+37
    %v189 = vand.u32 %v162, 2147483648
    %v190 = vor.u32 1.1754944e-38, %v189
    %v191 = vsel %vm188, %v190, %v186
    %v192 = vmul.f32 1.0, %v191
    %v193 = vmax.f32 %v153, 0.0
    %v194 = vmax.f32 %v154, 0.0
    %v195 = vand.u32 2147483647, %v153
    %v196 = vand.u32 2147483647, %v154
    %v197 = vsub.f32 0.0, %v195
    %v198 = vsub.f32 0.0, %v196
    %v199 = vmul.f32 %v197, 1.442695
    %v200 = vpow.pop %v199
    %v201 = vmul.f32 %v198, 1.442695
    %v202 = vpow.pop %v201
    %v203 = vadd.f32 %v200, 1.0
    %v204 = vadd.f32 %v202, 1.0
    %v205 = vlog2.pop %v203
    %v206 = vmul.f32 %v205, 0.6931472
    %v207 = vlog2.pop %v204
    %v208 = vmul.f32 %v207, 0.6931472
    %v209 = vadd.f32 %v193, %v206
    %v210 = vadd.f32 %v194, %v208
    %v211 = vsub.f32 0.0, %v209
    %v212 = vsub.f32 0.0, %v210
    %v213 = vmax.f32 %v211, -46.0517
    %v214 = vmax.f32 %v212, -46.0517
    %v215 = vlaneseq
    %v216 = vshrl.u32 %v215, 7
    %v217 = vlaneseq
    %v218 = vand.u32 %v217, 127
    %vm219 = vcmp.le.s32.totalorder %v216, %v218
    %v220 = vsel %vm219, 1, 0
    %v221 = vcvt.s32.f32 %v220
    %224 = vset.pattern.permute.xlu0 0
    %225 = vperm.xlu0 %224, %v213
    %v226 = vpop.permute.xlu0 %225
    %227 = vset.pattern.permute.xlu0 0
    %228 = vperm.xlu0 %227, %v214
    %v229 = vpop.permute.xlu0 %228
    %v230 = vperm.slane %v226, %v218
    %v231 = vperm.slane %v229, %v218
    %vm232 = vcmask 1041409
    %v233 = vsel %vm232, %v231, %v230
    %vm234 = vcmask 64512
    %v235 = vsel %vm234, %v233, 0
    %237 = vmatpush.msra.mxu0 0.0
    %238 = vmatpush.msra.mxu0 0.0
    %239 = vmatpush.msra.mxu0 0.0
    %240 = vmatpush.msra.mxu0 0.0
    %241 = vmatpush.msra.mxu0 0.0
    %242 = vmatpush.msra.mxu0 0.0
    %243 = vmatpush.msra.mxu0 0.0
    %244 = vmatpush.msra.mxu0 0.0
    %245 = vmatpush.msra.mxu0 0.0
    %246 = vmatpush.msra.mxu0 0.0
    %247 = vmatpush.msra.mxu0 0.0
    %248 = vmatpush.msra.mxu0 0.0
    %249 = vmatpush.msra.mxu0 0.0
    %250 = vmatpush.msra.mxu0 0.0
    %251 = vmatpush.msra.mxu0 0.0
    %252 = vmatpush.msra.mxu0 %v221
    %253 = vmatmul.f32.gmra.mxu0 %v235
    %v254 = vpop.f32.mrf.mxu0
    %v255 = vadd.f32 0.0, %v254
    %256 = vdwg.mxu0
    %v258 = vsub.f32 %v255, %v233
    %v259 = vmul.f32 %v258, 1.442695
    %v260 = vpow.pop %v259
    %v261 = vsub.f32 0.0, %v258
    %v262 = vmin.f32 %v261, 46.0517
    %v263 = vmul.f32 %v262, 1.442695
    %v264 = vpow.pop %v263
    %v265 = vld [vmem:[#allocation6] sm:$0x3]
    %v266 = vmul.f32 %v265, %v264
    %v268 = vsel %vm234, %v266, 0
    %270 = vmatpush.msra.mxu0 0.0
    %271 = vmatpush.msra.mxu0 0.0
    %272 = vmatpush.msra.mxu0 0.0
    %273 = vmatpush.msra.mxu0 0.0
    %274 = vmatpush.msra.mxu0 0.0
    %275 = vmatpush.msra.mxu0 0.0
    %276 = vmatpush.msra.mxu0 0.0
    %277 = vmatpush.msra.mxu0 0.0
    %278 = vmatpush.msra.mxu0 0.0
    %279 = vmatpush.msra.mxu0 0.0
    %280 = vmatpush.msra.mxu0 0.0
    %281 = vmatpush.msra.mxu0 0.0
    %282 = vmatpush.msra.mxu0 0.0
    %283 = vmatpush.msra.mxu0 0.0
    %284 = vmatpush.msra.mxu0 0.0
    %285 = vmatpush.msra.mxu0 %v221
    %286 = vmatmul.f32.gmra.mxu0 %v268
    %v287 = vpop.f32.mrf.mxu0
    %v288 = vadd.f32 0.0, %v287
    %289 = vdwg.mxu0
    %v291 = vperm.slane %v260, 0
    %v292 = vlaneseq
    %v293 = vshrl.u32 %v292, 7
    %295 = vset.pattern.permute.xlu0 %v293
    %296 = vperm.xlu0 %295, %v291
    %v297 = vpop.permute.xlu0 %296
    %v298 = vperm.slane %v260, 1
    %v299 = vlaneseq
    %v300 = vshrl.u32 %v299, 7
    %302 = vset.pattern.permute.xlu0 %v300
    %303 = vperm.xlu0 %302, %v298
    %v304 = vpop.permute.xlu0 %303
    %v307 = vmul.f32 %v177, %v297
    %v308 = vmul.f32 %v192, %v304
    %v310 = vperm.slane %v288, 0
    %v311 = vlaneseq
    %v312 = vshrl.u32 %v311, 7
    %314 = vset.pattern.permute.xlu0 %v312
    %315 = vperm.xlu0 %314, %v310
    %v316 = vpop.permute.xlu0 %315
    %v317 = vperm.slane %v288, 1
    %v318 = vlaneseq
    %v319 = vshrl.u32 %v318, 7
    %321 = vset.pattern.permute.xlu0 %v319
    %322 = vperm.xlu0 %321, %v317
    %v323 = vpop.permute.xlu0 %322
    %v326 = vmul.f32 %v307, %v316
    %v327 = vmul.f32 %v308, %v323
    %330 = vset.pattern.permute.xlu0 0
    %331 = vperm.xlu0 %330, %v326
    %v332 = vpop.permute.xlu0 %331
    %333 = vset.pattern.permute.xlu0 0
    %334 = vperm.xlu0 %333, %v327
    %v335 = vpop.permute.xlu0 %334
    %v336 = vperm.slane %v332, %v218
    %v337 = vperm.slane %v335, %v218
    %v338 = vsel %vm232, %v337, %v336
    %vm340 = vcmask 58368
    %341 = vst.msk [vmem:[#allocation9] sm:$0x3] %vm340, %v338
    // Predicated region
    $region42: #{tpu_custom_call.1} parent=1 // pred_check
      _
    $region43: #{tpu_custom_call.1} parent=1 // pred_check_branch
      %343 = sbr.rel (0) target = $region45
    $region44: #{tpu_custom_call.1} parent=1 // pred_region
      %345 = vsyncadd [#allocation5], 0
      %s347 = sshll.u32 [#allocation9], 4
      %s348 = int_to_ptr.vmem [resolvable:$true] %s347
      %s349 = sshll.u32 %s7, 4
      %s350 = int_to_ptr.hbm [resolvable:$true] %s349
      %352 = dma.vmem_to_hbm [thread:$0]  %s348, 32, %s350, [#allocation5]
    $region45: #{tpu_custom_call.1} parent=1 // pred_fallthru
      _
    // Predicated region
    $region46: #{tpu_custom_call.1} parent=1 // pred_check
      _
    $region47: #{tpu_custom_call.1} parent=1 // pred_check_branch
      %354 = sbr.rel (0) target = $region49
    $region48: #{tpu_custom_call.1} parent=1 // pred_region
      %356 = dma.done [#allocation5], 32
    $region49: #{tpu_custom_call.1} parent=1 // pred_fallthru
      _
    %357 = vsyncpa [#allocation4], 1
    %358 = vsyncpa [#allocation7], 1
    %359 = vsyncpa [#allocation5], 1

</llo_original>
